<compile_context>
chip_gen: v6e
topology: v6e:2x2x1
jax: 0.10.0
libtpu: 0.0.40
codegen_flags: <defaults>
</compile_context>

<pallas_src>
import jax
import jax.numpy as jnp
from jax.experimental import pallas as pl
from jax.experimental.pallas import tpu as pltpu


def _round_up(x, m):
    return ((x + m - 1) // m) * m


def _vmem_capacity_bytes():
    try:
        return int(pltpu.get_tpu_info().vmem_capacity_bytes)
    except Exception:
        return 64 * 2**20  # conservative fallback (v7x per-TensorCore VMEM)


# --------------------------------------------------------------------------- kernels
def _make_resident_kernel(gelu_approximate):
    """Single grid axis over row tiles; W1/W2/biases stay resident in VMEM."""

    def kernel(x_ref, w1_ref, b1_ref, w2_ref, b2_ref, o_ref):
        # fc1 on the MXU at compute dtype (bf16 fast path), f32 accumulation.
        h = jnp.dot(x_ref[...], w1_ref[...], preferred_element_type=jnp.float32)
        h = h + b1_ref[...]                       # b1 is f32
        h = jax.nn.gelu(h, approximate=gelu_approximate)
        # dropout(p=0.0) -> identity (elided).
        out = jnp.dot(h.astype(w2_ref.dtype), w2_ref[...],
                      preferred_element_type=jnp.float32)
        o_ref[...] = (out + b2_ref[...]).astype(o_ref.dtype)

    return kernel


def _make_chunked_kernel_f32out(gelu_approximate):
    """grid = (row_tiles, hidden_chunks); accumulate directly into the resident
    f32 output block (no scratch, b2 folded into the init)."""

    def kernel(x_ref, w1_ref, b1_ref, w2_ref, b2_ref, o_ref):
        k = pl.program_id(1)

        @pl.when(k == 0)
        def _init():
            o_ref[...] = jnp.broadcast_to(b2_ref[...], o_ref.shape)

        h = jnp.dot(x_ref[...], w1_ref[...], preferred_element_type=jnp.float32)
        h = h + b1_ref[...]
        h = jax.nn.gelu(h, approximate=gelu_approximate)
        # dropout(p=0.0) -> identity (elided).
        o_ref[...] += jnp.dot(h.astype(w2_ref.dtype), w2_ref[...],
                              preferred_element_type=jnp.float32)

    return kernel


def _make_chunked_kernel_scratch(gelu_approximate):
    """Chunked path for non-f32 outputs: f32 VMEM accumulator + init/finalize."""

    def kernel(x_ref, w1_ref, b1_ref, w2_ref, b2_ref, o_ref, acc_ref):
        k = pl.program_id(1)

        @pl.when(k == 0)
        def _init():
            acc_ref[...] = jnp.zeros_like(acc_ref)

        h = jnp.dot(x_ref[...], w1_ref[...], preferred_element_type=jnp.float32)
        h = h + b1_ref[...]
        h = jax.nn.gelu(h, approximate=gelu_approximate)
        acc_ref[...] += jnp.dot(h.astype(w2_ref.dtype), w2_ref[...],
                                preferred_element_type=jnp.float32)

        @pl.when(k == pl.num_programs(1) - 1)
        def _fin():
            o_ref[...] = (acc_ref[...] + b2_ref[...]).astype(o_ref.dtype)

    return kernel


# --------------------------------------------------------------------------- wrapper
def prepare_mlp_params(w1, b1, w2, b2, *, compute_dtype=jnp.bfloat16):
    """One-time weight preparation (hoist out of the per-call path): cast weights to the
    MXU compute dtype and pad feature dims to lane-dense multiples of 128. Biases are
    kept in f32 (they are added to f32 accumulators).

    w1: (in_f, hid)   fc1 weight, pre-transposed (torch fc1.weight.T)
    w2: (hid, out_f)  fc2 weight, pre-transposed (torch fc2.weight.T)
    """
    in_f, hid = w1.shape
    out_f = w2.shape[1]
    in_p, hid_p, out_p = (_round_up(d, 128) for d in (in_f, hid, out_f))

    # Zero padding is exactly neutral through fc1 + GELU + fc2 (GELU(0) == 0).
    w1p = jnp.pad(w1.astype(compute_dtype), ((0, in_p - in_f), (0, hid_p - hid)))
    w2p = jnp.pad(w2.astype(compute_dtype), ((0, hid_p - hid), (0, out_p - out_f)))
    b1p = jnp.pad(b1.astype(jnp.float32), (0, hid_p - hid)).reshape(1, hid_p)
    b2p = jnp.pad(b2.astype(jnp.float32), (0, out_p - out_f)).reshape(1, out_p)

    return dict(w1=w1p, b1=b1p, w2=w2p, b2=b2p,
                in_features=in_f, hidden_features=hid, out_features=out_f,
                compute_dtype=jnp.dtype(compute_dtype))


def mlp_block(x, params, *, tm=None, tk_hidden=512, gelu_approximate=None):
    """MLPBlock forward. x: (..., in_features); params from prepare_mlp_params()."""
    in_f = params["in_features"]
    out_f = params["out_features"]
    compute_dtype = params["compute_dtype"]
    w1p, b1p, w2p, b2p = params["w1"], params["b1"], params["w2"], params["b2"]
    in_p, hid_p = w1p.shape
    out_p = w2p.shape[1]

    assert x.shape[-1] == in_f, "last dim of x must equal in_features"
    lead = x.shape[:-1]
    x2 = x.reshape(-1, in_f)
    n = x2.shape[0]
    out_dtype = x.dtype

    if gelu_approximate is None:
        # tanh-GELU error is below bf16 rounding noise -> take the EUP path for bf16.
        # TODO(synk): set explicitly to False if exact-erf GELU is required in bf16.
        gelu_approximate = compute_dtype == jnp.dtype(jnp.bfloat16)

    cb = compute_dtype.itemsize
    ob = jnp.dtype(out_dtype).itemsize
    vmem_cap = _vmem_capacity_bytes()

    # Row tile: multiple of the sublane packing for the compute dtype; bigger tm on
    # chips with more VMEM (v5e/v6e 128 MiB) to cut weight re-streaming on the
    # chunked path and amortize per-step overhead.
    sublane = {4: 8, 2: 16, 1: 32}.get(cb, 8)
    if tm is None:
        tm = 512 if vmem_cap >= 100 * 2**20 else 256
    tm_eff = tm if n >= tm else _round_up(n, sublane)
    n_p = _round_up(n, tm_eff)
    row_tiles = n_p // tm_eff

    # Per-call activation prep only (weights were padded once in prepare_mlp_params).
    x2c = x2.astype(compute_dtype)
    if n_p != n or in_p != in_f:
        x2c = jnp.pad(x2c, ((0, n_p - n), (0, in_p - in_f)))

    # ---- VMEM accounting (incl. the f32 GELU intermediate + its bf16 downcast copy)
    bias_bytes = 2 * (hid_p + out_p) * 4
    act_bytes = 2 * (tm_eff * in_p * cb + tm_eff * out_p * ob)
    weight_bytes_resident = 2 * (in_p * hid_p + hid_p * out_p) * cb  # 2x: buffer pair
    h_bytes_resident = tm_eff * hid_p * (4 + cb)
    resident_needed = weight_bytes_resident + act_bytes + bias_bytes + h_bytes_resident
    budget = int(0.70 * vmem_cap)

    if resident_needed <= budget:
        # Resident-weight path: W1/W2 DMA'd from HBM exactly once (constant block index),
        # instead of once per row tile (and per TensorCore on v7x megacore).
        kernel = _make_resident_kernel(gelu_approximate)
        grid = (row_tiles,)
        in_specs = [
            pl.BlockSpec((tm_eff, in_p), lambda i: (i, 0)),   # x row tile
            pl.BlockSpec((in_p, hid_p), lambda i: (0, 0)),    # W1 (resident)
            pl.BlockSpec((1, hid_p), lambda i: (0, 0)),       # b1 (resident)
            pl.BlockSpec((hid_p, out_p), lambda i: (0, 0)),   # W2 (resident)
            pl.BlockSpec((1, out_p), lambda i: (0, 0)),       # b2 (resident)
        ]
        out_specs = pl.BlockSpec((tm_eff, out_p), lambda i: (i, 0))
        scratch_shapes = []
        dim_sem = ("parallel",)
        vmem_needed = resident_needed
        weight_stream_bytes = (in_p * hid_p + hid_p * out_p) * cb + (hid_p + out_p) * 4
    else:
        # Chunked fallback: stream the hidden dim as the last ("arbitrary") grid axis.
        tk = 128
        for cand in (tk_hidden, 512, 256, 128):
            if cand and cand <= hid_p and hid_p % cand == 0:
                tk = cand
                break
        if jnp.dtype(out_dtype) == jnp.dtype(jnp.float32):
            kernel = _make_chunked_kernel_f32out(gelu_approximate)
            scratch_shapes = []
            acc_bytes = 0
        else:
            kernel = _make_chunked_kernel_scratch(gelu_approximate)
            scratch_shapes = [pltpu.VMEM((tm_eff, out_p), jnp.float32)]
            acc_bytes = tm_eff * out_p * 4
        grid = (row_tiles, hid_p // tk)
        in_specs = [
            pl.BlockSpec((tm_eff, in_p), lambda i, k: (i, 0)),  # x row tile (resident over k)
            pl.BlockSpec((in_p, tk), lambda i, k: (0, k)),      # W1 hidden chunk
            pl.BlockSpec((1, tk), lambda i, k: (0, k)),         # b1 chunk
            pl.BlockSpec((tk, out_p), lambda i, k: (k, 0)),     # W2 hidden chunk
            pl.BlockSpec((1, out_p), lambda i, k: (0, 0)),      # b2
        ]
        out_specs = pl.BlockSpec((tm_eff, out_p), lambda i, k: (i, 0))
        dim_sem = ("parallel", "arbitrary")
        vmem_needed = (
            2 * (tm_eff * in_p * cb + in_p * tk * cb + tk * 4
                 + tk * out_p * cb + out_p * 4 + tm_eff * out_p * ob)
            + acc_bytes
            + tm_eff * tk * (4 + cb)          # f32 GELU intermediate + downcast copy
        )
        weight_stream_bytes = row_tiles * ((in_p * hid_p + hid_p * out_p) * cb
                                           + (hid_p + out_p) * 4)

    vmem_limit = int(min(max(int(1.25 * vmem_needed) + (2 << 20), 16 * 2**20),
                         int(0.92 * vmem_cap)))

    cost = pl.CostEstimate(
        flops=2 * n_p * (in_p * hid_p + hid_p * out_p),
        transcendentals=n_p * hid_p,
        bytes_accessed=(n_p * in_p * cb + n_p * out_p * ob + weight_stream_bytes),
    )

    out_padded = pl.pallas_call(
        kernel,
        out_shape=jax.ShapeDtypeStruct((n_p, out_p), out_dtype),
        grid_spec=pltpu.PrefetchScalarGridSpec(
            num_scalar_prefetch=0,
            grid=grid,
            in_specs=in_specs,
            out_specs=out_specs,
            scratch_shapes=scratch_shapes,
        ),
        compiler_params=pltpu.CompilerParams(
            dimension_semantics=dim_sem,
            vmem_limit_bytes=vmem_limit,
        ),
        cost_estimate=cost,
    )(x2c, w1p, b1p, w2p, b2p)

    return out_padded[:n, :out_f].reshape(*lead, out_f)


def _reference(x, w1, b1, w2, b2):
    h = x @ w1 + b1
    h = jax.nn.gelu(h, approximate=False)
    return h @ w2 + b2


if __name__ == "__main__":
    key = jax.random.PRNGKey(0)
    k_x, k_w1, k_b1, k_w2, k_b2 = jax.random.split(key, 5)

    batch, seq = 2, 8
    in_features, hidden_features, out_features = 32, 64, 32

    # (B, S, C) activations, as the PyTorch module receives them.
    x = jax.random.normal(k_x, (batch, seq, in_features), jnp.float32)

    # Deterministic synthetic parameters, stored as [in, out] (torch fc.weight.T).
    w1 = jax.random.normal(k_w1, (in_features, hidden_features), jnp.float32) * 0.05
    b1 = jax.random.normal(k_b1, (hidden_features,), jnp.float32) * 0.05
    w2 = jax.random.normal(k_w2, (hidden_features, out_features), jnp.float32) * 0.05
    b2 = jax.random.normal(k_b2, (out_features,), jnp.float32) * 0.05

    # One-time weight prep (cast to bf16 + lane-dense padding), off the per-call path.
    params = prepare_mlp_params(w1, b1, w2, b2, compute_dtype=jnp.bfloat16)

    out = mlp_block(x, params)
    out = jax.block_until_ready(out)

    ref = _reference(x.reshape(-1, in_features), w1, b1, w2, b2)
    ref = ref.reshape(batch, seq, out_features)

    assert out.shape == (batch, seq, out_features)
    err = float(jnp.max(jnp.abs(out.astype(jnp.float32) - ref)))
    # bf16 compute -> bf16-level tolerance vs the f32 reference.
    assert err < 2e-2, f"mismatch vs reference: max abs err = {err}"

    print("KERNEL_OK")
</pallas_src>

<mosaic_0001>
module attributes {stable_mosaic.version = 11 : i64} {
  func.func @kernel(%arg0: i32, %arg1: memref<16x128xbf16, #tpu.memory_space<vmem>>, %arg2: memref<128x128xbf16, #tpu.memory_space<vmem>>, %arg3: memref<1x128xf32, #tpu.memory_space<vmem>>, %arg4: memref<128x128xbf16, #tpu.memory_space<vmem>>, %arg5: memref<1x128xf32, #tpu.memory_space<vmem>>, %arg6: memref<16x128xf32, #tpu.memory_space<vmem>>) attributes {dimension_semantics = [#tpu.dimension_semantics<parallel>], iteration_bounds = array<i64: 1>, scalar_prefetch = 0 : i64, scratch_operands = 0 : i64, tpu.core_type = #tpu.core_type<tc>, window_params = [{transform_indices = @transform_0, window_bounds = array<i64: 16, 128>}, {pipeline_mode = #tpu.pipeline_mode<synchronous>, transform_indices = @transform_1, window_bounds = array<i64: 128, 128>}, {pipeline_mode = #tpu.pipeline_mode<synchronous>, transform_indices = @transform_2, window_bounds = array<i64: 1, 128>}, {pipeline_mode = #tpu.pipeline_mode<synchronous>, transform_indices = @transform_3, window_bounds = array<i64: 128, 128>}, {pipeline_mode = #tpu.pipeline_mode<synchronous>, transform_indices = @transform_4, window_bounds = array<i64: 1, 128>}, {transform_indices = @transform_5, window_bounds = array<i64: 16, 128>}]} {
    %c0 = arith.constant 0 : index
    %c0_0 = arith.constant 0 : index
    %0 = vector.load %arg1[%c0, %c0_0] : memref<16x128xbf16, #tpu.memory_space<vmem>>, vector<16x128xbf16>
    %c0_1 = arith.constant 0 : index
    %c0_2 = arith.constant 0 : index
    %1 = vector.load %arg2[%c0_1, %c0_2] : memref<128x128xbf16, #tpu.memory_space<vmem>>, vector<128x128xbf16>
    %cst = arith.constant dense<0.000000e+00> : vector<16x128xf32>
    %2 = tpu.matmul %0, %1, %cst {dimension_numbers = #tpu.dot_dimension_numbers<[1], [0], [0], [1], [0, 0, 1, 1], [], []>} : vector<16x128xbf16>, vector<128x128xbf16>, vector<16x128xf32> -> vector<16x128xf32>
    %c0_3 = arith.constant 0 : index
    %c0_4 = arith.constant 0 : index
    %3 = vector.load %arg3[%c0_3, %c0_4] : memref<1x128xf32, #tpu.memory_space<vmem>>, vector<1x128xf32>
    %4 = vector.broadcast %3 : vector<1x128xf32> to vector<16x128xf32>
    %5 = arith.addf %2, %4 : vector<16x128xf32>
    %6 = arith.mulf %5, %5 : vector<16x128xf32>
    %7 = arith.mulf %5, %6 : vector<16x128xf32>
    %cst_5 = arith.constant 4.471500e-02 : f32
    %8 = vector.broadcast %cst_5 : f32 to vector<16x128xf32>
    %9 = arith.mulf %8, %7 : vector<16x128xf32>
    %10 = arith.addf %5, %9 : vector<16x128xf32>
    %cst_6 = arith.constant 0.797884583 : f32
    %11 = vector.broadcast %cst_6 : f32 to vector<16x128xf32>
    %12 = arith.mulf %11, %10 : vector<16x128xf32>
    %13 = math.tanh %12 : vector<16x128xf32>
    %cst_7 = arith.constant 1.000000e+00 : f32
    %14 = vector.broadcast %cst_7 : f32 to vector<16x128xf32>
    %15 = arith.addf %14, %13 : vector<16x128xf32>
    %cst_8 = arith.constant 5.000000e-01 : f32
    %16 = vector.broadcast %cst_8 : f32 to vector<16x128xf32>
    %17 = arith.mulf %16, %15 : vector<16x128xf32>
    %18 = arith.mulf %5, %17 : vector<16x128xf32>
    %19 = arith.truncf %18 : vector<16x128xf32> to vector<16x128xbf16>
    %c0_9 = arith.constant 0 : index
    %c0_10 = arith.constant 0 : index
    %20 = vector.load %arg4[%c0_9, %c0_10] : memref<128x128xbf16, #tpu.memory_space<vmem>>, vector<128x128xbf16>
    %cst_11 = arith.constant dense<0.000000e+00> : vector<16x128xf32>
    %21 = tpu.matmul %19, %20, %cst_11 {dimension_numbers = #tpu.dot_dimension_numbers<[1], [0], [0], [1], [0, 0, 1, 1], [], []>} : vector<16x128xbf16>, vector<128x128xbf16>, vector<16x128xf32> -> vector<16x128xf32>
    %c0_12 = arith.constant 0 : index
    %c0_13 = arith.constant 0 : index
    %22 = vector.load %arg5[%c0_12, %c0_13] : memref<1x128xf32, #tpu.memory_space<vmem>>, vector<1x128xf32>
    %23 = vector.broadcast %22 : vector<1x128xf32> to vector<16x128xf32>
    %24 = arith.addf %21, %23 : vector<16x128xf32>
    %c0_14 = arith.constant 0 : index
    %c0_15 = arith.constant 0 : index
    %25 = vector.load %arg6[%c0_14, %c0_15] : memref<16x128xf32, #tpu.memory_space<vmem>>, vector<16x128xf32>
    tpu.vector_store %arg6[%c0_14, %c0_15], %24 {strides = array<i32>} : memref<16x128xf32, #tpu.memory_space<vmem>>, vector<16x128xf32>,
    return
  }
  func.func @transform_0(%arg0: i32) -> (i32, i32) {
    %c0_i32 = arith.constant 0 : i32
    %c0_i32_0 = arith.constant 0 : i32
    return %arg0, %c0_i32 : i32, i32
  }
  func.func @transform_1(%arg0: i32) -> (i32, i32) {
    %c0_i32 = arith.constant 0 : i32
    %c0_i32_0 = arith.constant 0 : i32
    %c0_i32_1 = arith.constant 0 : i32
    return %c0_i32, %c0_i32_0 : i32, i32
  }
  func.func @transform_2(%arg0: i32) -> (i32, i32) {
    %c0_i32 = arith.constant 0 : i32
    %c0_i32_0 = arith.constant 0 : i32
    %c0_i32_1 = arith.constant 0 : i32
    return %c0_i32, %c0_i32_0 : i32, i32
  }
  func.func @transform_3(%arg0: i32) -> (i32, i32) {
    %c0_i32 = arith.constant 0 : i32
    %c0_i32_0 = arith.constant 0 : i32
    %c0_i32_1 = arith.constant 0 : i32
    return %c0_i32, %c0_i32_0 : i32, i32
  }
  func.func @transform_4(%arg0: i32) -> (i32, i32) {
    %c0_i32 = arith.constant 0 : i32
    %c0_i32_0 = arith.constant 0 : i32
    %c0_i32_1 = arith.constant 0 : i32
    return %c0_i32, %c0_i32_0 : i32, i32
  }
  func.func @transform_5(%arg0: i32) -> (i32, i32) {
    %c0_i32 = arith.constant 0 : i32
    %c0_i32_0 = arith.constant 0 : i32
    return %arg0, %c0_i32 : i32, i32
  }
}

</mosaic_0001>

<llo_original>
// kernel: tpu_custom_call.1
$region0: #{tpu_custom_call.1}
  #allocation0 [shape = 'u32[]', space=smem, size = 0x4, offset = 0x4, fixed_abs, tag = 'smem constant byte address 0x4 - core index']
  #allocation1 [shape = 'u32[144,128]{1,0:T(1,128)}', space=vmem, size = 0x12000, scoped, tag = 'internal scratch']
  %s0 = inlined_call_operand.hbm [shape: bf16[16,128], index: 0, kind: input, shape index: {}]
  %s1 = inlined_call_operand.hbm [shape: bf16[128,128], index: 1, kind: input, shape index: {}]
  %s2 = inlined_call_operand.vmem [shape: f32[1,128], index: 2, kind: input, shape index: {}]
  %s3 = inlined_call_operand.hbm [shape: bf16[128,128], index: 3, kind: input, shape index: {}]
  %s4 = inlined_call_operand.vmem [shape: f32[1,128], index: 4, kind: input, shape index: {}]
  %s5 = inlined_call_operand.hbm [shape: f32[16,128], index: 5, kind: output, shape index: {}]
  %s6 = sld [smem:[#allocation0]]
  $region42: #{tpu_custom_call.1} parent=0
    _
  %s8 = ssub.s32 1, %s6
  %s9 = scalar_select 0, %s8, %s6
  $region1: #{tpu_custom_call.1} parent=0
    #allocation2 [shape = 'u8[4096]{0}', space=vmem, size = 0x1000, scoped, tag = 'input window, operand 0, single buffered']
    #allocation3 [shape = 's32[1]{0}', space=sflag, size = 0x4, scoped, tag = 'scoped memory for tpu_custom_call.1']
    #allocation4 [shape = 's32[1]{0}', space=sflag, size = 0x4, scoped, tag = 'scoped memory for tpu_custom_call.1']
    #allocation5 [shape = 'u8[32768]{0}', space=vmem, size = 0x8000, scoped, tag = 'input window, operand 1, single buffered']
    #allocation6 [shape = 's32[1]{0}', space=sflag, size = 0x4, scoped, tag = 'scoped memory for tpu_custom_call.1']
    #allocation7 [shape = 'u8[32768]{0}', space=vmem, size = 0x8000, scoped, tag = 'input window, operand 3, single buffered']
    #allocation8 [shape = 'u8[8192]{0}', space=vmem, size = 0x2000, scoped, tag = 'output window, operand 0, single buffered']
    %10 = vsyncpa [#allocation3], 0
    %11 = vsyncpa [#allocation6], 0
    %12 = vsyncpa [#allocation4], 0
    // Predicated region
    $region2: #{tpu_custom_call.1} parent=1 // pred_check
      _
    $region3: #{tpu_custom_call.1} parent=1 // pred_check_branch
      %14 = sbr.rel (0) target = $region5
    $region4: #{tpu_custom_call.1} parent=1 // pred_region
      %s16 = ssub.s32 128, 128
      %17 = vsyncadd [#allocation3], %s16
      %s18 = sshll.u32 [#allocation2], 4
      %s19 = int_to_ptr.vmem [resolvable:$true] %s18
      %24 = dma.hbm_to_vmem [thread:$0]  %s0, 128, %s19, [#allocation3], 64, 64, 4
    $region5: #{tpu_custom_call.1} parent=1 // pred_fallthru
      _
    // Predicated region
    $region6: #{tpu_custom_call.1} parent=1 // pred_check
      _
    $region7: #{tpu_custom_call.1} parent=1 // pred_check_branch
      %26 = sbr.rel (0) target = $region9
    $region8: #{tpu_custom_call.1} parent=1 // pred_region
      %s28 = ssub.s32 1024, 1024
      %29 = vsyncadd [#allocation6], %s28
      %s30 = sshll.u32 [#allocation5], 4
      %s31 = int_to_ptr.vmem [resolvable:$true] %s30
      %36 = dma.hbm_to_vmem [thread:$0]  %s1, 1024, %s31, [#allocation6], 64, 64, 4
    $region9: #{tpu_custom_call.1} parent=1 // pred_fallthru
      _
    // Predicated region
    $region10: #{tpu_custom_call.1} parent=1 // pred_check
      _
    $region11: #{tpu_custom_call.1} parent=1 // pred_check_branch
      %38 = sbr.rel (0) target = $region13
    $region12: #{tpu_custom_call.1} parent=1 // pred_region
      _
    $region13: #{tpu_custom_call.1} parent=1 // pred_fallthru
      _
    // Predicated region
    $region14: #{tpu_custom_call.1} parent=1 // pred_check
      _
    $region15: #{tpu_custom_call.1} parent=1 // pred_check_branch
      %40 = sbr.rel (0) target = $region17
    $region16: #{tpu_custom_call.1} parent=1 // pred_region
      %s42 = ssub.s32 1024, 1024
      %43 = vsyncadd [#allocation6], %s42
      %s44 = sshll.u32 [#allocation7], 4
      %s45 = int_to_ptr.vmem [resolvable:$true] %s44
      %50 = dma.hbm_to_vmem [thread:$0]  %s3, 1024, %s45, [#allocation6], 64, 64, 4
    $region17: #{tpu_custom_call.1} parent=1 // pred_fallthru
      _
    // Predicated region
    $region18: #{tpu_custom_call.1} parent=1 // pred_check
      _
    $region19: #{tpu_custom_call.1} parent=1 // pred_check_branch
      %52 = sbr.rel (0) target = $region21
    $region20: #{tpu_custom_call.1} parent=1 // pred_region
      _
    $region21: #{tpu_custom_call.1} parent=1 // pred_fallthru
      _
    // Predicated region
    $region22: #{tpu_custom_call.1} parent=1 // pred_check
      _
    $region23: #{tpu_custom_call.1} parent=1 // pred_check_branch
      %54 = sbr.rel (0) target = $region25
    $region24: #{tpu_custom_call.1} parent=1 // pred_region
      %55 = dma.done [#allocation3], 128
    $region25: #{tpu_custom_call.1} parent=1 // pred_fallthru
      _
    // Predicated region
    $region26: #{tpu_custom_call.1} parent=1 // pred_check
      _
    $region27: #{tpu_custom_call.1} parent=1 // pred_check_branch
      %57 = sbr.rel (0) target = $region29
    $region28: #{tpu_custom_call.1} parent=1 // pred_region
      %58 = dma.done [#allocation6], 1024
    $region29: #{tpu_custom_call.1} parent=1 // pred_fallthru
      _
    // Predicated region
    $region30: #{tpu_custom_call.1} parent=1 // pred_check
      _
    $region31: #{tpu_custom_call.1} parent=1 // pred_check_branch
      %60 = sbr.rel (0) target = $region33
    $region32: #{tpu_custom_call.1} parent=1 // pred_region
      %61 = dma.done [#allocation6], 1024
    $region33: #{tpu_custom_call.1} parent=1 // pred_fallthru
      _
    %v63 = vld [vmem:[#allocation2] sm:$0xf]
    %v64 = vld [vmem:[#allocation2 + $0x4] sm:$0xf]
    %v65 = vld [vmem:[#allocation5] sm:$0xf]
    %v66 = vld [vmem:[#allocation5 + $0x4] sm:$0xf]
    %v67 = vld [vmem:[#allocation5 + $0x8] sm:$0xf]
    %v68 = vld [vmem:[#allocation5 + $0xc] sm:$0xf]
    %v69 = vld [vmem:[#allocation5 + $0x10] sm:$0xf]
    %v70 = vld [vmem:[#allocation5 + $0x14] sm:$0xf]
    %v71 = vld [vmem:[#allocation5 + $0x18] sm:$0xf]
    %v72 = vld [vmem:[#allocation5 + $0x1c] sm:$0xf]
    %v73 = vld [vmem:[#allocation5 + $0x20] sm:$0xf]
    %v74 = vld [vmem:[#allocation5 + $0x24] sm:$0xf]
    %v75 = vld [vmem:[#allocation5 + $0x28] sm:$0xf]
    %v76 = vld [vmem:[#allocation5 + $0x2c] sm:$0xf]
    %v77 = vld [vmem:[#allocation5 + $0x30] sm:$0xf]
    %v78 = vld [vmem:[#allocation5 + $0x34] sm:$0xf]
    %v79 = vld [vmem:[#allocation5 + $0x38] sm:$0xf]
    %v80 = vld [vmem:[#allocation5 + $0x3c] sm:$0xf]
    %v81 = vld [vmem:[%s2] sm:$0x1]
    %v83 = vlaneseq
    %v84 = vshrl.u32 %v83, 7
    %v85 = vsub.s32 0, %v84
    %v86 = vrot.slane %v81, %v85
    %v90 = vunpack.c.l.b16 %v63
    %v91 = vunpack.c.l.b16 %v64
    %v92 = vpack.c.b16 %v91, %v90
    %v110 = vunpack.c.l.b16 %v65
    %v111 = vunpack.c.l.b16 %v66
    %v112 = vunpack.c.l.b16 %v67
    %v113 = vunpack.c.l.b16 %v68
    %v114 = vunpack.c.l.b16 %v69
    %v115 = vunpack.c.l.b16 %v70
    %v116 = vunpack.c.l.b16 %v71
    %v117 = vunpack.c.l.b16 %v72
    %v118 = vunpack.c.l.b16 %v73
    %v119 = vunpack.c.l.b16 %v74
    %v120 = vunpack.c.l.b16 %v75
    %v121 = vunpack.c.l.b16 %v76
    %v122 = vunpack.c.l.b16 %v77
    %v123 = vunpack.c.l.b16 %v78
    %v124 = vunpack.c.l.b16 %v79
    %v125 = vunpack.c.l.b16 %v80
    %v126 = vpack.c.b16 %v111, %v110
    %v127 = vpack.c.b16 %v113, %v112
    %v128 = vpack.c.b16 %v115, %v114
    %v129 = vpack.c.b16 %v117, %v116
    %v130 = vpack.c.b16 %v119, %v118
    %v131 = vpack.c.b16 %v121, %v120
    %v132 = vpack.c.b16 %v123, %v122
    %v133 = vpack.c.b16 %v125, %v124
    %142 = vmatprep.subr.bf16.mxu0 0
    %143 = vmatpush1.bf16.msra.mxu0 %v133
    %144 = vmatprep.subr.bf16.mxu0 0
    %145 = vmatpush1.bf16.msra.mxu0 %v132
    %146 = vmatprep.subr.bf16.mxu0 0
    %147 = vmatpush1.bf16.msra.mxu0 %v131
    %148 = vmatprep.subr.bf16.mxu0 0
    %149 = vmatpush1.bf16.msra.mxu0 %v130
    %150 = vmatprep.subr.bf16.mxu0 0
    %151 = vmatpush1.bf16.msra.mxu0 %v129
    %152 = vmatprep.subr.bf16.mxu0 0
    %153 = vmatpush1.bf16.msra.mxu0 %v128
    %154 = vmatprep.subr.bf16.mxu0 0
    %155 = vmatpush1.bf16.msra.mxu0 %v127
    %156 = vmatprep.subr.bf16.mxu0 0
    %157 = vmatpush1.bf16.msra.mxu0 %v126
    %158 = vmatprep.subr.bf16.mxu0 0
    %159 = vmatpush2.bf16.msra.mxu0 0
    %160 = vmatprep.subr.bf16.mxu0 0
    %161 = vmatpush2.bf16.msra.mxu0 0
    %162 = vmatprep.subr.bf16.mxu0 0
    %163 = vmatpush2.bf16.msra.mxu0 0
    %164 = vmatprep.subr.bf16.mxu0 0
    %165 = vmatpush2.bf16.msra.mxu0 0
    %166 = vmatprep.subr.bf16.mxu0 0
    %167 = vmatpush2.bf16.msra.mxu0 0
    %168 = vmatprep.subr.bf16.mxu0 0
    %169 = vmatpush2.bf16.msra.mxu0 0
    %170 = vmatprep.subr.bf16.mxu0 0
    %171 = vmatpush2.bf16.msra.mxu0 0
    %172 = vmatprep.subr.bf16.mxu0 0
    %173 = vmatpush2.bf16.msra.mxu0 0
    %174 = vmatprep.mubr.bf16.mxu0 0
    %175 = vmatmul.mubr.bf16.gmra.mxu0 %v92
    %v176 = vpop.f32.mrf.mxu0
    %v177 = vadd.f32 %v86, %v176
    %v178 = vpop.f32.mrf.mxu0
    %v179 = vpop.f32.mrf.mxu0
    %v180 = vadd.f32 %v86, %v179
    %v181 = vpop.f32.mrf.mxu0
    %182 = vdwg.mxu0
    %v183 = vmul.f32 %v177, %v177
    %v184 = vmul.f32 %v180, %v180
    %v185 = vmul.f32 %v177, %v183
    %v186 = vmul.f32 %v180, %v184
    %v187 = vmul.f32 %v185, 0.044715
    %v188 = vmul.f32 %v186, 0.044715
    %v189 = vadd.f32 %v177, %v187
    %v190 = vadd.f32 %v180, %v188
    %v191 = vmul.f32 %v189, 0.7978846
    %v192 = vmul.f32 %v190, 0.7978846
    %v193 = vtanh.pop %v191
    %v194 = vtanh.pop %v192
    %v195 = vadd.f32 %v193, 1.0
    %v196 = vadd.f32 %v194, 1.0
    %v197 = vmul.f32 %v195, 0.5
    %v198 = vmul.f32 %v196, 0.5
    %v199 = vmul.f32 %v177, %v197
    %v200 = vmul.f32 %v180, %v198
    %v201 = vpack.c.bf16 %v200, %v199
    %v202 = vld [vmem:[#allocation7] sm:$0xf]
    %v203 = vld [vmem:[#allocation7 + $0x4] sm:$0xf]
    %v204 = vld [vmem:[#allocation7 + $0x8] sm:$0xf]
    %v205 = vld [vmem:[#allocation7 + $0xc] sm:$0xf]
    %v206 = vld [vmem:[#allocation7 + $0x10] sm:$0xf]
    %v207 = vld [vmem:[#allocation7 + $0x14] sm:$0xf]
    %v208 = vld [vmem:[#allocation7 + $0x18] sm:$0xf]
    %v209 = vld [vmem:[#allocation7 + $0x1c] sm:$0xf]
    %v210 = vld [vmem:[#allocation7 + $0x20] sm:$0xf]
    %v211 = vld [vmem:[#allocation7 + $0x24] sm:$0xf]
    %v212 = vld [vmem:[#allocation7 + $0x28] sm:$0xf]
    %v213 = vld [vmem:[#allocation7 + $0x2c] sm:$0xf]
    %v214 = vld [vmem:[#allocation7 + $0x30] sm:$0xf]
    %v215 = vld [vmem:[#allocation7 + $0x34] sm:$0xf]
    %v216 = vld [vmem:[#allocation7 + $0x38] sm:$0xf]
    %v217 = vld [vmem:[#allocation7 + $0x3c] sm:$0xf]
    %v218 = vld [vmem:[%s4] sm:$0x1]
    %v220 = vlaneseq
    %v221 = vshrl.u32 %v220, 7
    %v222 = vsub.s32 0, %v221
    %v223 = vrot.slane %v218, %v222
    %v241 = vunpack.c.l.b16 %v202
    %v242 = vunpack.c.l.b16 %v203
    %v243 = vunpack.c.l.b16 %v204
    %v244 = vunpack.c.l.b16 %v205
    %v245 = vunpack.c.l.b16 %v206
    %v246 = vunpack.c.l.b16 %v207
    %v247 = vunpack.c.l.b16 %v208
    %v248 = vunpack.c.l.b16 %v209
    %v249 = vunpack.c.l.b16 %v210
    %v250 = vunpack.c.l.b16 %v211
    %v251 = vunpack.c.l.b16 %v212
    %v252 = vunpack.c.l.b16 %v213
    %v253 = vunpack.c.l.b16 %v214
    %v254 = vunpack.c.l.b16 %v215
    %v255 = vunpack.c.l.b16 %v216
    %v256 = vunpack.c.l.b16 %v217
    %v257 = vpack.c.b16 %v242, %v241
    %v258 = vpack.c.b16 %v244, %v243
    %v259 = vpack.c.b16 %v246, %v245
    %v260 = vpack.c.b16 %v248, %v247
    %v261 = vpack.c.b16 %v250, %v249
    %v262 = vpack.c.b16 %v252, %v251
    %v263 = vpack.c.b16 %v254, %v253
    %v264 = vpack.c.b16 %v256, %v255
    %273 = vmatprep.subr.bf16.mxu0 0
    %274 = vmatpush1.bf16.msra.mxu0 %v264
    %275 = vmatprep.subr.bf16.mxu0 0
    %276 = vmatpush1.bf16.msra.mxu0 %v263
    %277 = vmatprep.subr.bf16.mxu0 0
    %278 = vmatpush1.bf16.msra.mxu0 %v262
    %279 = vmatprep.subr.bf16.mxu0 0
    %280 = vmatpush1.bf16.msra.mxu0 %v261
    %281 = vmatprep.subr.bf16.mxu0 0
    %282 = vmatpush1.bf16.msra.mxu0 %v260
    %283 = vmatprep.subr.bf16.mxu0 0
    %284 = vmatpush1.bf16.msra.mxu0 %v259
    %285 = vmatprep.subr.bf16.mxu0 0
    %286 = vmatpush1.bf16.msra.mxu0 %v258
    %287 = vmatprep.subr.bf16.mxu0 0
    %288 = vmatpush1.bf16.msra.mxu0 %v257
    %289 = vmatprep.subr.bf16.mxu0 0
    %290 = vmatpush2.bf16.msra.mxu0 0
    %291 = vmatprep.subr.bf16.mxu0 0
    %292 = vmatpush2.bf16.msra.mxu0 0
    %293 = vmatprep.subr.bf16.mxu0 0
    %294 = vmatpush2.bf16.msra.mxu0 0
    %295 = vmatprep.subr.bf16.mxu0 0
    %296 = vmatpush2.bf16.msra.mxu0 0
    %297 = vmatprep.subr.bf16.mxu0 0
    %298 = vmatpush2.bf16.msra.mxu0 0
    %299 = vmatprep.subr.bf16.mxu0 0
    %300 = vmatpush2.bf16.msra.mxu0 0
    %301 = vmatprep.subr.bf16.mxu0 0
    %302 = vmatpush2.bf16.msra.mxu0 0
    %303 = vmatprep.subr.bf16.mxu0 0
    %304 = vmatpush2.bf16.msra.mxu0 0
    %305 = vmatprep.mubr.bf16.mxu0 0
    %306 = vmatmul.mubr.bf16.gmra.mxu0 %v201
    %v307 = vpop.f32.mrf.mxu0
    %v308 = vadd.f32 %v223, %v307
    %v309 = vpop.f32.mrf.mxu0
    %v310 = vpop.f32.mrf.mxu0
    %v311 = vadd.f32 %v223, %v310
    %v312 = vpop.f32.mrf.mxu0
    %313 = vdwg.mxu0
    %314 = vst [vmem:[#allocation8] sm:$0xff] %v308
    %315 = vst [vmem:[#allocation8 + $0x8] sm:$0xff] %v311
    // Predicated region
    $region34: #{tpu_custom_call.1} parent=1 // pred_check
      _
    $region35: #{tpu_custom_call.1} parent=1 // pred_check_branch
      %317 = sbr.rel (0) target = $region37
    $region36: #{tpu_custom_call.1} parent=1 // pred_region
      %s319 = ssub.s32 256, 256
      %320 = vsyncadd [#allocation4], %s319
      %s321 = sshll.u32 [#allocation8], 4
      %s322 = int_to_ptr.vmem [resolvable:$true] %s321
      %327 = dma.vmem_to_hbm [thread:$0]  %s322, 256, %s5, [#allocation4], 128, 128, 8
    $region37: #{tpu_custom_call.1} parent=1 // pred_fallthru
      _
    // Predicated region
    $region38: #{tpu_custom_call.1} parent=1 // pred_check
      _
    $region39: #{tpu_custom_call.1} parent=1 // pred_check_branch
      %329 = sbr.rel (0) target = $region41
    $region40: #{tpu_custom_call.1} parent=1 // pred_region
      %330 = dma.done [#allocation4], 256
    $region41: #{tpu_custom_call.1} parent=1 // pred_fallthru
      _
    %331 = vsyncpa [#allocation3], 1
    %332 = vsyncpa [#allocation6], 1
    %333 = vsyncpa [#allocation4], 1

</llo_original>
